<compile_context>
chip_gen: v6e
topology: v6e:2x2x1
jax: 0.10.0
libtpu: 0.0.40
codegen_flags: <defaults>
</compile_context>

<pallas_src>
import jax
import jax.numpy as jnp
from jax import lax
from jax.experimental import pallas as pl
from jax.experimental.pallas import tpu as pltpu

KH = KW = 3  # kernel_size=3, padding=1 -> 'same' spatial output


def _conv_relu_kernel(p_ref, w_ref, o_ref):
    """Single grid step, whole batch in one MXU matmul.

    p_ref: (Kp, N*HW)   bf16 im2col patches (zero-padded along K)
    w_ref: (Cout, Kp)   bf16 reshaped conv weights (zero-padded along K)
    o_ref: (Cout, N*HW) output (f32), lane-dense (N*HW multiple of 128)
    """
    acc = jnp.dot(w_ref[...], p_ref[...],
                  preferred_element_type=jnp.float32)      # (Cout, N*HW) f32
    o_ref[...] = jnp.maximum(acc, 0.0).astype(o_ref.dtype)  # ReLU + cast


def single_layer_forward(x_nchw, w_oihw, *, compute_dtype=jnp.bfloat16):
    """relu(conv2d(x, w, padding=1, bias=False)); x is NCHW, w is OIHW."""
    N, Cin, H, W = x_nchw.shape
    Cout = w_oihw.shape[0]
    K = Cin * KH * KW
    HW = H * W
    NHW = N * HW
    # Pad the contraction dim to a bf16-friendly sublane-pack multiple (16).
    Kp = ((K + 15) // 16) * 16  # 36 -> 48

    # --- im2col in plain JAX: cast FIRST, keep N adjacent to HW. -----------
    # patches[ci*9 + kh*3 + kw, n*HW + h*W + w] = x_pad[n, ci, h+kh, w+kw]
    xb = x_nchw.astype(compute_dtype)                        # bf16 before pad
    xp = jnp.pad(xb, ((0, 0), (0, 0), (1, 1), (1, 1)))       # (N,Cin,H+2,W+2)
    xp = xp.transpose(1, 0, 2, 3)                            # (Cin,N,H+2,W+2)
    taps = [xp[:, :, kh:kh + H, kw:kw + W]
            for kh in range(KH) for kw in range(KW)]         # 9 x (Cin,N,H,W)
    patches = jnp.stack(taps, axis=1)                        # (Cin,9,N,H,W)
    patches = patches.reshape(K, NHW)                        # (K, N*HW)
    patches = jnp.pad(patches, ((0, Kp - K), (0, 0)))        # (Kp, N*HW)

    # w2[cout, ci*9 + kh*3 + kw] = w[cout, ci, kh, kw] (matches patches).
    w2 = w_oihw.reshape(Cout, K).astype(compute_dtype)
    w2 = jnp.pad(w2, ((0, 0), (0, Kp - K)))                  # (Cout, Kp)

    out_dtype = x_nchw.dtype
    bytes_accessed = (Kp * NHW * 2) + (Cout * Kp * 2) + \
                     (Cout * NHW * jnp.dtype(out_dtype).itemsize)

    out = pl.pallas_call(
        _conv_relu_kernel,
        out_shape=jax.ShapeDtypeStruct((Cout, NHW), out_dtype),
        grid_spec=pltpu.PrefetchScalarGridSpec(
            num_scalar_prefetch=0,
            grid=(1,),                                       # single step
            in_specs=[
                pl.BlockSpec((Kp, NHW), lambda i: (0, 0)),
                pl.BlockSpec((Cout, Kp), lambda i: (0, 0)),
            ],
            out_specs=pl.BlockSpec((Cout, NHW), lambda i: (0, 0)),
        ),
        compiler_params=pltpu.CompilerParams(
            dimension_semantics=("arbitrary",)),
        cost_estimate=pl.CostEstimate(
            flops=2 * Cout * Kp * NHW,
            bytes_accessed=bytes_accessed,
            transcendentals=0),
    )(patches, w2)

    # (Cout, N*HW) -> NCHW: tiny wrapper-side transpose (XLA fuses it).
    return out.reshape(Cout, N, H, W).transpose(1, 0, 2, 3)


if __name__ == "__main__":
    # Small shapes consistent with the module: batch=2, Cin=4, Cout=8, 16x16.
    N, Cin, Cout, H, W = 2, 4, 8, 16, 16

    key = jax.random.PRNGKey(0)
    kx, kw = jax.random.split(key)
    x = jax.random.normal(kx, (N, Cin, H, W), dtype=jnp.float32)
    # Deterministic weight init (Conv2d weight shape: (Cout, Cin, 3, 3)).
    fan_in = Cin * KH * KW
    w = jax.random.normal(kw, (Cout, Cin, KH, KW), dtype=jnp.float32) / jnp.sqrt(fan_in)

    out = jax.jit(single_layer_forward)(x, w)
    out = jax.block_until_ready(out)
    assert out.shape == (N, Cout, H, W)

    # Reference 1: matched precision (bf16 operands, f32 accumulation).
    ref_bf16 = lax.conv_general_dilated(
        x.astype(jnp.bfloat16), w.astype(jnp.bfloat16),
        window_strides=(1, 1), padding=((1, 1), (1, 1)),
        dimension_numbers=("NCHW", "OIHW", "NCHW"),
        preferred_element_type=jnp.float32)
    ref_bf16 = jnp.maximum(ref_bf16, 0.0).astype(x.dtype)
    assert jnp.allclose(out, ref_bf16, atol=1e-2, rtol=1e-2)

    # Reference 2: full-f32 conv (loose tolerance — bf16 operand rounding).
    ref_f32 = lax.conv_general_dilated(
        x, w, window_strides=(1, 1), padding=((1, 1), (1, 1)),
        dimension_numbers=("NCHW", "OIHW", "NCHW"))
    ref_f32 = jnp.maximum(ref_f32, 0.0)
    assert jnp.allclose(out, ref_f32, atol=6e-2, rtol=6e-2)

    print("KERNEL_OK")
</pallas_src>

<mosaic_0001>
module attributes {stable_mosaic.version = 11 : i64} {
  func.func @_conv_relu_kernel(%arg0: i32, %arg1: memref<48x512xbf16, #tpu.memory_space<vmem>>, %arg2: memref<8x48xbf16, #tpu.memory_space<vmem>>, %arg3: memref<8x512xf32, #tpu.memory_space<vmem>>) attributes {dimension_semantics = [#tpu.dimension_semantics<arbitrary>], iteration_bounds = array<i64: 1>, scalar_prefetch = 0 : i64, scratch_operands = 0 : i64, tpu.core_type = #tpu.core_type<tc>, window_params = [{pipeline_mode = #tpu.pipeline_mode<synchronous>, transform_indices = @transform_0, window_bounds = array<i64: 48, 512>}, {pipeline_mode = #tpu.pipeline_mode<synchronous>, transform_indices = @transform_1, window_bounds = array<i64: 8, 48>}, {pipeline_mode = #tpu.pipeline_mode<synchronous>, transform_indices = @transform_2, window_bounds = array<i64: 8, 512>}]} {
    %c0 = arith.constant 0 : index
    %c0_0 = arith.constant 0 : index
    %0 = vector.load %arg2[%c0, %c0_0] : memref<8x48xbf16, #tpu.memory_space<vmem>>, vector<8x48xbf16>
    %c0_1 = arith.constant 0 : index
    %c0_2 = arith.constant 0 : index
    %1 = vector.load %arg1[%c0_1, %c0_2] : memref<48x512xbf16, #tpu.memory_space<vmem>>, vector<48x512xbf16>
    %cst = arith.constant dense<0.000000e+00> : vector<8x512xf32>
    %2 = tpu.matmul %0, %1, %cst {dimension_numbers = #tpu.dot_dimension_numbers<[1], [0], [0], [1], [0, 0, 1, 1], [], []>} : vector<8x48xbf16>, vector<48x512xbf16>, vector<8x512xf32> -> vector<8x512xf32>
    %cst_3 = arith.constant 0.000000e+00 : f32
    %3 = vector.broadcast %cst_3 : f32 to vector<8x512xf32>
    %4 = arith.maximumf %2, %3 : vector<8x512xf32>
    %c0_4 = arith.constant 0 : index
    %c0_5 = arith.constant 0 : index
    %5 = vector.load %arg3[%c0_4, %c0_5] : memref<8x512xf32, #tpu.memory_space<vmem>>, vector<8x512xf32>
    tpu.vector_store %arg3[%c0_4, %c0_5], %4 {strides = array<i32>} : memref<8x512xf32, #tpu.memory_space<vmem>>, vector<8x512xf32>,
    return
  }
  func.func @transform_0(%arg0: i32) -> (i32, i32) {
    %c0_i32 = arith.constant 0 : i32
    %c0_i32_0 = arith.constant 0 : i32
    %c0_i32_1 = arith.constant 0 : i32
    return %c0_i32, %c0_i32_0 : i32, i32
  }
  func.func @transform_1(%arg0: i32) -> (i32, i32) {
    %c0_i32 = arith.constant 0 : i32
    %c0_i32_0 = arith.constant 0 : i32
    %c0_i32_1 = arith.constant 0 : i32
    return %c0_i32, %c0_i32_0 : i32, i32
  }
  func.func @transform_2(%arg0: i32) -> (i32, i32) {
    %c0_i32 = arith.constant 0 : i32
    %c0_i32_0 = arith.constant 0 : i32
    %c0_i32_1 = arith.constant 0 : i32
    return %c0_i32, %c0_i32_0 : i32, i32
  }
}

</mosaic_0001>

<llo_original>
// kernel: single_layer_forward.1
$region0: #{single_layer_forward.1}
  #allocation0 [shape = 'u32[]', space=smem, size = 0x4, offset = 0x4, fixed_abs, tag = 'smem constant byte address 0x4 - core index']
  #allocation1 [shape = 'u32[144,128]{1,0:T(1,128)}', space=vmem, size = 0x12000, scoped, tag = 'internal scratch']
  %s0 = inlined_call_operand.vmem [shape: bf16[48,512], index: 0, kind: input, shape index: {}]
  %s1 = inlined_call_operand.vmem [shape: bf16[8,48], index: 1, kind: input, shape index: {}]
  %s2 = inlined_call_operand.vmem [shape: f32[8,512], index: 2, kind: output, shape index: {}]
  %s3 = sld [smem:[#allocation0]]
  $region18: #{single_layer_forward.1} parent=0
    _
  %s5 = ssub.s32 1, %s3
  %s6 = scalar_select 0, %s5, %s3
  // Predicated region
  $region2: #{single_layer_forward.1} parent=0 // pred_check
    _
  $region3: #{single_layer_forward.1} parent=0 // pred_check_branch
    %8 = sbr.rel (0) target = $region5
  $region4: #{single_layer_forward.1} parent=0 // pred_region
    _
  $region5: #{single_layer_forward.1} parent=0 // pred_fallthru
    _
  // Predicated region
  $region6: #{single_layer_forward.1} parent=0 // pred_check
    _
  $region7: #{single_layer_forward.1} parent=0 // pred_check_branch
    %10 = sbr.rel (0) target = $region9
  $region8: #{single_layer_forward.1} parent=0 // pred_region
    _
  $region9: #{single_layer_forward.1} parent=0 // pred_fallthru
    _
  %v12 = vld [vmem:[%s1] sm:$0xf]
  %v13 = vld [vmem:[%s0] sm:$0xff]
  %v14 = vld [vmem:[%s0 + $0x8] sm:$0xff]
  %v15 = vld [vmem:[%s0 + $0x10] sm:$0xff]
  %v16 = vld [vmem:[%s0 + $0x18] sm:$0xff]
  %v17 = vld [vmem:[%s0 + $0x20] sm:$0xff]
  %v18 = vld [vmem:[%s0 + $0x28] sm:$0xff]
  %v19 = vld [vmem:[%s0 + $0x30] sm:$0xff]
  %v20 = vld [vmem:[%s0 + $0x38] sm:$0xff]
  %v21 = vld [vmem:[%s0 + $0x40] sm:$0xff]
  %v22 = vld [vmem:[%s0 + $0x48] sm:$0xff]
  %v23 = vld [vmem:[%s0 + $0x50] sm:$0xff]
  %v24 = vld [vmem:[%s0 + $0x58] sm:$0xff]
  %v37 = vunpack.c.l.b16 %v13
  %v38 = vunpack.c.h.b16 %v13
  %v39 = vunpack.c.l.b16 %v14
  %v40 = vunpack.c.h.b16 %v14
  %v41 = vunpack.c.l.b16 %v15
  %v42 = vunpack.c.h.b16 %v15
  %v43 = vunpack.c.l.b16 %v16
  %v44 = vunpack.c.h.b16 %v16
  %v45 = vunpack.c.l.b16 %v17
  %v46 = vunpack.c.h.b16 %v17
  %v47 = vunpack.c.l.b16 %v18
  %v48 = vunpack.c.h.b16 %v18
  %v49 = vunpack.c.l.b16 %v19
  %v50 = vunpack.c.h.b16 %v19
  %v51 = vunpack.c.l.b16 %v20
  %v52 = vunpack.c.h.b16 %v20
  %v53 = vunpack.c.l.b16 %v21
  %v54 = vunpack.c.h.b16 %v21
  %v55 = vunpack.c.l.b16 %v22
  %v56 = vunpack.c.h.b16 %v22
  %v57 = vunpack.c.l.b16 %v23
  %v58 = vunpack.c.h.b16 %v23
  %v59 = vunpack.c.l.b16 %v24
  %v60 = vunpack.c.h.b16 %v24
  %v61 = vpack.c.b16 %v41, %v37
  %v62 = vpack.c.b16 %v42, %v38
  %v63 = vpack.c.b16 %v43, %v39
  %v64 = vpack.c.b16 %v44, %v40
  %v65 = vpack.c.b16 %v49, %v45
  %v66 = vpack.c.b16 %v50, %v46
  %v67 = vpack.c.b16 %v51, %v47
  %v68 = vpack.c.b16 %v52, %v48
  %v69 = vpack.c.b16 %v57, %v53
  %v70 = vpack.c.b16 %v58, %v54
  %v71 = vpack.c.b16 %v59, %v55
  %v72 = vpack.c.b16 %v60, %v56
  %vm85 = vcmask 392192
  %v87 = vsel %vm85, %v12, 0
  %89 = vmatprep.subr.bf16.mxu0 0
  %90 = vmatpush1.bf16.msra.mxu0 0
  %91 = vmatprep.subr.bf16.mxu0 0
  %92 = vmatpush1.bf16.msra.mxu0 0
  %93 = vmatprep.subr.bf16.mxu0 0
  %94 = vmatpush1.bf16.msra.mxu0 0
  %95 = vmatprep.subr.bf16.mxu0 0
  %96 = vmatpush1.bf16.msra.mxu0 0
  %97 = vmatprep.subr.bf16.mxu0 0
  %98 = vmatpush1.bf16.msra.mxu0 0
  %99 = vmatprep.subr.bf16.mxu0 %v70
  %100 = vmatpush1.bf16.msra.mxu0 %v69
  %101 = vmatprep.subr.bf16.mxu0 %v66
  %102 = vmatpush1.bf16.msra.mxu0 %v65
  %103 = vmatprep.subr.bf16.mxu0 %v62
  %104 = vmatpush1.bf16.msra.mxu0 %v61
  %105 = vmatprep.subr.bf16.mxu0 0
  %106 = vmatpush2.bf16.msra.mxu0 0
  %107 = vmatprep.subr.bf16.mxu0 0
  %108 = vmatpush2.bf16.msra.mxu0 0
  %109 = vmatprep.subr.bf16.mxu0 0
  %110 = vmatpush2.bf16.msra.mxu0 0
  %111 = vmatprep.subr.bf16.mxu0 0
  %112 = vmatpush2.bf16.msra.mxu0 0
  %113 = vmatprep.subr.bf16.mxu0 0
  %114 = vmatpush2.bf16.msra.mxu0 0
  %115 = vmatprep.subr.bf16.mxu0 0
  %116 = vmatpush2.bf16.msra.mxu0 0
  %117 = vmatprep.subr.bf16.mxu0 0
  %118 = vmatpush2.bf16.msra.mxu0 0
  %119 = vmatprep.subr.bf16.mxu0 0
  %120 = vmatpush2.bf16.msra.mxu0 0
  %121 = vmatprep.mubr.bf16.mxu0 0
  %122 = vmatmul.mubr.bf16.gmra.mxu0 %v87
  %v123 = vpop.f32.mrf.mxu0
  %v124 = vadd.f32 0.0, %v123
  %v125 = vpop.f32.mrf.mxu0
  %v126 = vadd.f32 0.0, %v125
  %v127 = vpop.f32.mrf.mxu0
  %v128 = vpop.f32.mrf.mxu0
  %129 = vdwg.mxu0
  %130 = vmatprep.subr.bf16.mxu0 0
  %131 = vmatpush1.bf16.msra.mxu0 0
  %132 = vmatprep.subr.bf16.mxu0 0
  %133 = vmatpush1.bf16.msra.mxu0 0
  %134 = vmatprep.subr.bf16.mxu0 0
  %135 = vmatpush1.bf16.msra.mxu0 0
  %136 = vmatprep.subr.bf16.mxu0 0
  %137 = vmatpush1.bf16.msra.mxu0 0
  %138 = vmatprep.subr.bf16.mxu0 0
  %139 = vmatpush1.bf16.msra.mxu0 0
  %140 = vmatprep.subr.bf16.mxu0 %v72
  %141 = vmatpush1.bf16.msra.mxu0 %v71
  %142 = vmatprep.subr.bf16.mxu0 %v68
  %143 = vmatpush1.bf16.msra.mxu0 %v67
  %144 = vmatprep.subr.bf16.mxu0 %v64
  %145 = vmatpush1.bf16.msra.mxu0 %v63
  %146 = vmatprep.subr.bf16.mxu0 0
  %147 = vmatpush2.bf16.msra.mxu0 0
  %148 = vmatprep.subr.bf16.mxu0 0
  %149 = vmatpush2.bf16.msra.mxu0 0
  %150 = vmatprep.subr.bf16.mxu0 0
  %151 = vmatpush2.bf16.msra.mxu0 0
  %152 = vmatprep.subr.bf16.mxu0 0
  %153 = vmatpush2.bf16.msra.mxu0 0
  %154 = vmatprep.subr.bf16.mxu0 0
  %155 = vmatpush2.bf16.msra.mxu0 0
  %156 = vmatprep.subr.bf16.mxu0 0
  %157 = vmatpush2.bf16.msra.mxu0 0
  %158 = vmatprep.subr.bf16.mxu0 0
  %159 = vmatpush2.bf16.msra.mxu0 0
  %160 = vmatprep.subr.bf16.mxu0 0
  %161 = vmatpush2.bf16.msra.mxu0 0
  %162 = vmatprep.mubr.bf16.mxu0 0
  %163 = vmatmul.mubr.bf16.gmra.mxu0 %v87
  %v164 = vpop.f32.mrf.mxu0
  %v165 = vadd.f32 0.0, %v164
  %v166 = vpop.f32.mrf.mxu0
  %v167 = vadd.f32 0.0, %v166
  %v168 = vpop.f32.mrf.mxu0
  %v169 = vpop.f32.mrf.mxu0
  %170 = vdwg.mxu0
  %v171 = vmax.f32 %v124, 0.0
  %v172 = vmax.f32 %v126, 0.0
  %v173 = vmax.f32 %v165, 0.0
  %v174 = vmax.f32 %v167, 0.0
  %175 = vst [vmem:[%s2] sm:$0xff] %v171
  %176 = vst [vmem:[%s2 + $0x8] sm:$0xff] %v172
  %177 = vst [vmem:[%s2 + $0x10] sm:$0xff] %v173
  %178 = vst [vmem:[%s2 + $0x18] sm:$0xff] %v174
  // Predicated region
  $region10: #{single_layer_forward.1} parent=0 // pred_check
    _
  $region11: #{single_layer_forward.1} parent=0 // pred_check_branch
    %180 = sbr.rel (0) target = $region13
  $region12: #{single_layer_forward.1} parent=0 // pred_region
    _
  $region13: #{single_layer_forward.1} parent=0 // pred_fallthru
    _
  // Predicated region
  $region14: #{single_layer_forward.1} parent=0 // pred_check
    _
  $region15: #{single_layer_forward.1} parent=0 // pred_check_branch
    %182 = sbr.rel (0) target = $region17
  $region16: #{single_layer_forward.1} parent=0 // pred_region
    _
  $region17: #{single_layer_forward.1} parent=0 // pred_fallthru
    _

</llo_original>
